<compile_context>
chip_gen: v7x
topology: tpu7x:2x2x1
jax: 0.10.0
libtpu: 0.0.40
codegen_flags: <defaults>
</compile_context>

<pallas_src>
import functools

import jax
import jax.numpy as jnp
import numpy as np
from jax import lax
from jax.experimental import pallas as pl
from jax.experimental.pallas import tpu as pltpu

_LANE = 128
_SUBLANE = 8


def _ceil_to(x, m):
    return (x + m - 1) // m * m


def _default_vmem_limit():
    """Generation-aware scoped-VMEM cap (v7x: 64 MiB physical, v4/5/6: 128 MiB)."""
    try:
        kind = jax.devices()[0].device_kind.lower()
    except Exception:
        kind = ""
    if "v7" in kind:
        return 48 * 1024 * 1024
    if any(t in kind for t in ("v4", "v5", "v6")):
        return 96 * 1024 * 1024
    return 32 * 1024 * 1024  # unknown / older parts: stay conservative


def _align_channels(c):
    # v6e/v7x MXUs are 256x256: 256-align once the dim exceeds one lane group;
    # 128 keeps small layers cheap and is exact for v5e's 128x128 MXU.
    return _ceil_to(c, 256) if c > _LANE else _LANE


def _pick_tile(dim, cap):
    """Largest multiple-of-128 tile <= cap that divides `dim` (dim is 128-aligned)."""
    if dim <= cap:
        return dim
    t = (cap // _LANE) * _LANE
    while t > _LANE and dim % t:
        t -= _LANE
    return t


# ----------------------------------------------------------------------------
# Pallas kernels
# ----------------------------------------------------------------------------
def _conv_gemm_stats_kernel(p_ref, w_ref, conv_ref, stats_ref, acc_ref):
    """One (pixel-tile, Cout-tile) GEMM step over the K (im2col) reduction axis.

    p_ref    : (TP, TK) bf16  im2col patch tile
    w_ref    : (TK, TN) bf16  flattened conv-weight tile
    conv_ref : (TP, TN) bf16  conv output tile (written at the last K step)
    stats_ref: (8,  TN) f32   rows 0/1 = per-channel sum / sum-of-squares
    acc_ref  : (TP, TN) f32   VMEM accumulator scratch
    """
    k = pl.program_id(2)

    @pl.when(k == 0)
    def _():
        acc_ref[...] = jnp.zeros_like(acc_ref)

    acc_ref[...] += jnp.dot(p_ref[...], w_ref[...],
                            preferred_element_type=jnp.float32)

    @pl.when(k == pl.num_programs(2) - 1)
    def _():
        acc = acc_ref[...]
        conv_ref[...] = acc.astype(conv_ref.dtype)
        s = jnp.sum(acc, axis=0, keepdims=True)
        sq = jnp.sum(acc * acc, axis=0, keepdims=True)
        pad = jnp.zeros((6, s.shape[1]), jnp.float32)
        # Full 8-sublane block -> unmasked, lane-dense store.
        stats_ref[...] = jnp.concatenate([s, sq, pad], axis=0)


def _conv_gemm_bias_kernel(p_ref, w_ref, b_ref, o_ref, acc_ref):
    """Conv-as-GEMM with bias (bn_act=False path); same 3-D grid/accumulator."""
    k = pl.program_id(2)

    @pl.when(k == 0)
    def _():
        acc_ref[...] = jnp.zeros_like(acc_ref)

    acc_ref[...] += jnp.dot(p_ref[...], w_ref[...],
                            preferred_element_type=jnp.float32)

    @pl.when(k == pl.num_programs(2) - 1)
    def _():
        o_ref[...] = (acc_ref[...] + b_ref[...]).astype(o_ref.dtype)


def _bn_apply_kernel(conv_ref, scale_ref, shift_ref, o_ref, *, neg_slope):
    """Apply precomputed BN affine (scale/shift) + LeakyReLU (f32 math)."""
    y = conv_ref[...].astype(jnp.float32) * scale_ref[...] + shift_ref[...]
    o_ref[...] = jnp.where(y >= 0.0, y, neg_slope * y).astype(o_ref.dtype)


# ----------------------------------------------------------------------------
# JAX glue: im2col (layout only), parameter flattening, NCHW <-> GEMM views.
# ----------------------------------------------------------------------------
def _im2col_nchw(x, ksize, stride, padding):
    """x: (N, Cin, H, W) -> (N*OH*OW, KH*KW*Cin), plus (N, OH, OW)."""
    N, C, H, W = x.shape
    kh = kw = ksize
    xp = jnp.pad(x, ((0, 0), (0, 0), (padding, padding), (padding, padding)))
    OH = (H + 2 * padding - kh) // stride + 1
    OW = (W + 2 * padding - kw) // stride + 1
    x_nhwc = jnp.transpose(xp, (0, 2, 3, 1))  # channels-last for gathering
    taps = []
    for i in range(kh):
        for j in range(kw):
            taps.append(x_nhwc[:, i:i + stride * OH:stride, j:j + stride * OW:stride, :])
    patches = jnp.stack(taps, axis=3)                      # (N, OH, OW, KH*KW, Cin)
    return patches.reshape(N * OH * OW, kh * kw * C), (N, OH, OW)


def cnn_block_forward(x, weight, *, gamma=None, beta=None, bias=None,
                      bn_act=True, stride=1, padding=0, eps=1e-5,
                      neg_slope=0.1, tile_p=1024, out_dtype=jnp.float32,
                      data_format="NCHW"):
    """CNNBlock.forward.  x: (N, Cin, H, W) NCHW; weight: (Cout, Cin, KH, KW)."""
    Cout, Cin, KH, KW = weight.shape
    assert KH == KW, "square kernels only in this demo"
    vmem_limit = _default_vmem_limit()

    # TODO(synk): fuse im2col into the GEMM kernel (pl.ANY + halo'd-row DMA or
    # KH*KW shifted-tap matmuls) to kill the KH*KW read amplification.
    patches, (N, OH, OW) = _im2col_nchw(x.astype(jnp.bfloat16), KH, stride, padding)
    P, K = patches.shape

    # Lane-dense padding; 256-aligned when the dim is MXU-sized (v6e/v7x).
    Kp = _align_channels(K)
    Cp = _align_channels(Cout)

    # Pixel tile: cap by tile_p and by ceil(P/2) so the "parallel" pixel axis
    # always has >=2 tiles (keeps both v7x TensorCores busy).
    half = _ceil_to(max(1, -(-P // 2)), _SUBLANE)
    tp = max(_SUBLANE, min(_ceil_to(tile_p, _SUBLANE), half))
    P_pad = _ceil_to(P, tp)
    n_pt = P_pad // tp

    tk = _pick_tile(Kp, 1024)
    tn = _pick_tile(Cp, 512)
    n_kt = Kp // tk
    n_ct = Cp // tn

    patches = jnp.pad(patches, ((0, P_pad - P), (0, Kp - K)))
    # weight[o, c, i, j] -> w2[(i*KW + j)*Cin + c, o] to match the patch layout.
    w2 = jnp.transpose(weight, (2, 3, 1, 0)).reshape(K, Cout).astype(jnp.bfloat16)
    w2 = jnp.pad(w2, ((0, Kp - K), (0, Cp - Cout)))

    gemm_cost = pl.CostEstimate(
        flops=2 * P_pad * Kp * Cp, transcendentals=0,
        bytes_accessed=(n_ct * P_pad * Kp * 2 + n_pt * Kp * Cp * 2 + P_pad * Cp * 2))
    gemm_params = pltpu.CompilerParams(
        dimension_semantics=("parallel", "parallel", "arbitrary"),
        vmem_limit_bytes=vmem_limit)

    gemm_grid = (n_pt, n_ct, n_kt)
    p_spec = pl.BlockSpec((tp, tk), lambda i, j, k: (i, k))
    w_spec = pl.BlockSpec((tk, tn), lambda i, j, k: (k, j))
    o_spec = pl.BlockSpec((tp, tn), lambda i, j, k: (i, j))
    acc_scratch = pltpu.VMEM((tp, tn), jnp.float32)
    out_bytes = np.dtype(out_dtype).itemsize

    if bn_act:
        # ---- pass 1: tiled GEMM (bf16 out) + per-tile per-channel stats ----
        conv_out, part_stats = pl.pallas_call(
            _conv_gemm_stats_kernel,
            out_shape=(jax.ShapeDtypeStruct((P_pad, Cp), jnp.bfloat16),
                       jax.ShapeDtypeStruct((n_pt, 8, Cp), jnp.float32)),
            grid=gemm_grid,
            in_specs=[p_spec, w_spec],
            out_specs=(o_spec,
                       pl.BlockSpec((None, 8, tn), lambda i, j, k: (i, 0, j))),
            scratch_shapes=[acc_scratch],
            compiler_params=gemm_params,
            cost_estimate=gemm_cost,
        )(patches, w2)

        # ---- tiny (Cout-sized) finalization of training-mode batch stats ---
        # Padded pixel rows are all-zero so they contribute nothing; dividing
        # by the true pixel count P gives exact stats.
        sums = jnp.sum(part_stats[:, 0, :], axis=0)            # (Cp,)
        sqs = jnp.sum(part_stats[:, 1, :], axis=0)             # (Cp,)
        mean = sums / P
        var = jnp.maximum(sqs / P - mean * mean, 0.0)           # biased variance
        g = jnp.pad(gamma.astype(jnp.float32), (0, Cp - Cout), constant_values=1.0)
        b = jnp.pad(beta.astype(jnp.float32), (0, Cp - Cout))
        scale_vec = g * lax.rsqrt(var + eps)
        shift_vec = b - mean * scale_vec
        scale = scale_vec.reshape(1, Cp)
        shift = shift_vec.reshape(1, Cp)

        # ---- pass 2: memory-bound affine + LeakyReLU; big decoupled tiles ---
        row_bytes = Cp * (2 + out_bytes) * 2               # double-buffered in+out
        max_rows = max(tp, ((vmem_limit // 3) // row_bytes) // _SUBLANE * _SUBLANE)
        factor = max(1, min(n_pt, max_rows // tp))
        f = max(d for d in range(1, factor + 1) if n_pt % d == 0)
        tp2 = tp * f
        n_pt2 = P_pad // tp2

        apply_cost = pl.CostEstimate(
            flops=4 * P_pad * Cp, transcendentals=0,
            bytes_accessed=P_pad * Cp * (2 + out_bytes))
        # Write the result in place of the conv intermediate when dtypes match.
        alias = {0: 0} if np.dtype(out_dtype) == np.dtype(jnp.bfloat16) else {}

        out2d = pl.pallas_call(
            functools.partial(_bn_apply_kernel, neg_slope=neg_slope),
            out_shape=jax.ShapeDtypeStruct((P_pad, Cp), out_dtype),
            grid=(n_pt2,),
            in_specs=[pl.BlockSpec((tp2, Cp), lambda i: (i, 0)),
                      pl.BlockSpec((1, Cp), lambda i: (0, 0)),
                      pl.BlockSpec((1, Cp), lambda i: (0, 0))],
            out_specs=pl.BlockSpec((tp2, Cp), lambda i: (i, 0)),
            compiler_params=pltpu.CompilerParams(
                dimension_semantics=("parallel",),
                vmem_limit_bytes=vmem_limit),
            cost_estimate=apply_cost,
            input_output_aliases=alias,
        )(conv_out, scale, shift)
        # TODO(synk): BatchNorm running_mean / running_var buffer updates (a
        # training-only side effect, not part of the returned tensor) are not
        # materialized.
    else:
        b = jnp.pad(bias.astype(jnp.float32), (0, Cp - Cout)).reshape(1, Cp)
        out2d = pl.pallas_call(
            _conv_gemm_bias_kernel,
            out_shape=jax.ShapeDtypeStruct((P_pad, Cp), out_dtype),
            grid=gemm_grid,
            in_specs=[p_spec, w_spec,
                      pl.BlockSpec((1, tn), lambda i, j, k: (0, j))],
            out_specs=o_spec,
            scratch_shapes=[acc_scratch],
            compiler_params=gemm_params,
            cost_estimate=gemm_cost,
        )(patches, w2, b)

    out = out2d[:P, :Cout].reshape(N, OH, OW, Cout)
    if data_format == "NHWC":
        return out                          # skips a full extra HBM transpose pass
    return jnp.transpose(out, (0, 3, 1, 2))  # NCHW (PyTorch layout)


# ----------------------------------------------------------------------------
# Pure-JAX reference (mirrors the PyTorch module) for the correctness check.
# ----------------------------------------------------------------------------
def _reference(x, weight, gamma, beta, bias, bn_act, stride, padding,
               eps=1e-5, neg_slope=0.1):
    y = lax.conv_general_dilated(
        x, weight, window_strides=(stride, stride),
        padding=[(padding, padding), (padding, padding)],
        dimension_numbers=('NCHW', 'OIHW', 'NCHW'))
    if bn_act:
        mean = jnp.mean(y, axis=(0, 2, 3), keepdims=True)
        var = jnp.mean((y - mean) ** 2, axis=(0, 2, 3), keepdims=True)
        y = (y - mean) / jnp.sqrt(var + eps)
        y = y * gamma.reshape(1, -1, 1, 1) + beta.reshape(1, -1, 1, 1)
        y = jnp.where(y >= 0.0, y, neg_slope * y)
    else:
        y = y + bias.reshape(1, -1, 1, 1)
    return y


if __name__ == "__main__":
    key = jax.random.PRNGKey(0)
    k_x, k_w, k_g, k_b, k_bias = jax.random.split(key, 5)

    # CNNBlock(in_channels=4, out_channels=8, kernel_size=3, stride=1, padding=1)
    N, Cin, H, W = 2, 4, 16, 16
    Cout, KS, STRIDE, PAD = 8, 3, 1, 1

    x = jax.random.normal(k_x, (N, Cin, H, W), dtype=jnp.float32)
    weight = 0.1 * jax.random.normal(k_w, (Cout, Cin, KS, KS), dtype=jnp.float32)
    gamma = 1.0 + 0.1 * jax.random.normal(k_g, (Cout,), dtype=jnp.float32)
    beta = 0.1 * jax.random.normal(k_b, (Cout,), dtype=jnp.float32)
    bias = 0.1 * jax.random.normal(k_bias, (Cout,), dtype=jnp.float32)

    ref_bn = _reference(x, weight, gamma, beta, bias, True, STRIDE, PAD)
    ref_nb = _reference(x, weight, gamma, beta, bias, False, STRIDE, PAD)

    # 1) bn_act=True, forced multi-tile grid (P = 512 pixels -> 4 tiles of 128):
    #    exercises the cross-tile batch-statistics accumulation.
    out_bn = jax.block_until_ready(
        cnn_block_forward(x, weight, gamma=gamma, beta=beta,
                          bn_act=True, stride=STRIDE, padding=PAD, tile_p=128))
    np.testing.assert_allclose(np.asarray(out_bn), np.asarray(ref_bn),
                               rtol=2e-2, atol=2e-2)

    # 2) bn_act=True, default tiling (2 pixel tiles: megacore-friendly split).
    out_bn1 = jax.block_until_ready(
        cnn_block_forward(x, weight, gamma=gamma, beta=beta,
                          bn_act=True, stride=STRIDE, padding=PAD))
    np.testing.assert_allclose(np.asarray(out_bn1), np.asarray(ref_bn),
                               rtol=2e-2, atol=2e-2)

    # 3) bn_act=False path: conv with bias only.
    out_nb = jax.block_until_ready(
        cnn_block_forward(x, weight, bias=bias,
                          bn_act=False, stride=STRIDE, padding=PAD, tile_p=128))
    np.testing.assert_allclose(np.asarray(out_nb), np.asarray(ref_nb),
                               rtol=2e-2, atol=2e-2)

    # 4) bn_act=True, bf16 output + NHWC layout: exercises the in-place alias of
    #    the conv intermediate and the transpose-free return path.
    out_bf = jax.block_until_ready(
        cnn_block_forward(x, weight, gamma=gamma, beta=beta,
                          bn_act=True, stride=STRIDE, padding=PAD,
                          out_dtype=jnp.bfloat16, data_format="NHWC"))
    ref_nhwc = jnp.transpose(ref_bn, (0, 2, 3, 1))
    np.testing.assert_allclose(np.asarray(out_bf.astype(jnp.float32)),
                               np.asarray(ref_nhwc), rtol=5e-2, atol=5e-2)

    assert out_bn.shape == (N, Cout, H, W) and out_nb.shape == (N, Cout, H, W)
    assert out_bf.shape == (N, H, W, Cout)
    print("KERNEL_OK")
</pallas_src>

<mosaic_0001>
module attributes {stable_mosaic.version = 11 : i64} {
  func.func @_conv_gemm_stats_kernel(%arg0: i32, %arg1: i32, %arg2: i32, %arg3: memref<128x128xbf16, #tpu.memory_space<vmem>>, %arg4: memref<128x128xbf16, #tpu.memory_space<vmem>>, %arg5: memref<128x128xbf16, #tpu.memory_space<vmem>>, %arg6: memref<1x8x128xf32, #tpu.memory_space<vmem>>, %arg7: memref<128x128xf32, #tpu.memory_space<vmem>>) attributes {dimension_semantics = [#tpu.dimension_semantics<parallel>, #tpu.dimension_semantics<parallel>, #tpu.dimension_semantics<arbitrary>], iteration_bounds = array<i64: 4, 1, 1>, scalar_prefetch = 0 : i64, scratch_operands = 1 : i64, tpu.core_type = #tpu.core_type<tc>, window_params = [{transform_indices = @transform_0, window_bounds = array<i64: 128, 128>}, {transform_indices = @transform_1, window_bounds = array<i64: 128, 128>}, {transform_indices = @transform_2, window_bounds = array<i64: 128, 128>}, {transform_indices = @transform_3, window_bounds = array<i64: 1, 8, 128>}]} {
    %c0_i32 = arith.constant 0 : i32
    %0 = arith.cmpi eq, %arg2, %c0_i32 : i32
    %1 = arith.extui %0 : i1 to i32
    %c0_i32_0 = arith.constant 0 : i32
    %2 = arith.cmpi ne, %1, %c0_i32_0 : i32
    scf.if %2 {
      %cst_10 = arith.constant 0.000000e+00 : f32
      %12 = vector.broadcast %cst_10 : f32 to vector<128x128xf32>
      %c0_11 = arith.constant 0 : index
      %c0_12 = arith.constant 0 : index
      %13 = vector.load %arg7[%c0_11, %c0_12] : memref<128x128xf32, #tpu.memory_space<vmem>>, vector<128x128xf32>
      tpu.vector_store %arg7[%c0_11, %c0_12], %12 {strides = array<i32>} : memref<128x128xf32, #tpu.memory_space<vmem>>, vector<128x128xf32>,
    } else {
    }
    %c0 = arith.constant 0 : index
    %c0_1 = arith.constant 0 : index
    %3 = vector.load %arg7[%c0, %c0_1] : memref<128x128xf32, #tpu.memory_space<vmem>>, vector<128x128xf32>
    %c0_2 = arith.constant 0 : index
    %c0_3 = arith.constant 0 : index
    %4 = vector.load %arg3[%c0_2, %c0_3] : memref<128x128xbf16, #tpu.memory_space<vmem>>, vector<128x128xbf16>
    %c0_4 = arith.constant 0 : index
    %c0_5 = arith.constant 0 : index
    %5 = vector.load %arg4[%c0_4, %c0_5] : memref<128x128xbf16, #tpu.memory_space<vmem>>, vector<128x128xbf16>
    %cst = arith.constant dense<0.000000e+00> : vector<128x128xf32>
    %6 = tpu.matmul %4, %5, %cst {dimension_numbers = #tpu.dot_dimension_numbers<[1], [0], [0], [1], [0, 0, 1, 1], [], []>} : vector<128x128xbf16>, vector<128x128xbf16>, vector<128x128xf32> -> vector<128x128xf32>
    %7 = arith.addf %3, %6 : vector<128x128xf32>
    %c0_6 = arith.constant 0 : index
    %c0_7 = arith.constant 0 : index
    %8 = vector.load %arg7[%c0_6, %c0_7] : memref<128x128xf32, #tpu.memory_space<vmem>>, vector<128x128xf32>
    tpu.vector_store %arg7[%c0_6, %c0_7], %7 {strides = array<i32>} : memref<128x128xf32, #tpu.memory_space<vmem>>, vector<128x128xf32>,
    %c0_i32_8 = arith.constant 0 : i32
    %9 = arith.cmpi eq, %arg2, %c0_i32_8 : i32
    %10 = arith.extui %9 : i1 to i32
    %c0_i32_9 = arith.constant 0 : i32
    %11 = arith.cmpi ne, %10, %c0_i32_9 : i32
    scf.if %11 {
      %c0_10 = arith.constant 0 : index
      %c0_11 = arith.constant 0 : index
      %12 = vector.load %arg7[%c0_10, %c0_11] : memref<128x128xf32, #tpu.memory_space<vmem>>, vector<128x128xf32>
      %13 = arith.truncf %12 : vector<128x128xf32> to vector<128x128xbf16>
      %c0_12 = arith.constant 0 : index
      %c0_13 = arith.constant 0 : index
      %14 = vector.load %arg5[%c0_12, %c0_13] : memref<128x128xbf16, #tpu.memory_space<vmem>>, vector<128x128xbf16>
      tpu.vector_store %arg5[%c0_12, %c0_13], %13 {strides = array<i32>} : memref<128x128xbf16, #tpu.memory_space<vmem>>, vector<128x128xbf16>,
      %cst_14 = arith.constant dense<0.000000e+00> : vector<128xf32>
      %15 = vector.multi_reduction <add>, %12, %cst_14 [0] : vector<128x128xf32> to vector<128xf32>
      %16 = vector.shape_cast %15 : vector<128xf32> to vector<1x128xf32>
      %17 = arith.mulf %12, %12 : vector<128x128xf32>
      %cst_15 = arith.constant dense<0.000000e+00> : vector<128xf32>
      %18 = vector.multi_reduction <add>, %17, %cst_15 [0] : vector<128x128xf32> to vector<128xf32>
      %19 = vector.shape_cast %18 : vector<128xf32> to vector<1x128xf32>
      %cst_16 = arith.constant 0.000000e+00 : f32
      %20 = vector.broadcast %cst_16 : f32 to vector<6x128xf32>
      %21 = tpu.concatenate %16, %19, %20 in 0 : vector<1x128xf32>, vector<1x128xf32>, vector<6x128xf32> -> vector<8x128xf32>
      %c0_17 = arith.constant 0 : index
      %c0_18 = arith.constant 0 : index
      %c0_19 = arith.constant 0 : index
      %22 = vector.load %arg6[%c0_17, %c0_18, %c0_19] : memref<1x8x128xf32, #tpu.memory_space<vmem>>, vector<1x8x128xf32>
      %23 = vector.shape_cast %22 : vector<1x8x128xf32> to vector<8x128xf32>
      %24 = vector.shape_cast %21 : vector<8x128xf32> to vector<1x8x128xf32>
      tpu.vector_store %arg6[%c0_17, %c0_18, %c0_19], %24 {strides = array<i32>} : memref<1x8x128xf32, #tpu.memory_space<vmem>>, vector<1x8x128xf32>,
    } else {
    }
    return
  }
  func.func @transform_0(%arg0: i32, %arg1: i32, %arg2: i32) -> (i32, i32) {
    %c0_i32 = arith.constant 0 : i32
    return %arg0, %arg2 : i32, i32
  }
  func.func @transform_1(%arg0: i32, %arg1: i32, %arg2: i32) -> (i32, i32) {
    %c0_i32 = arith.constant 0 : i32
    return %arg2, %arg1 : i32, i32
  }
  func.func @transform_2(%arg0: i32, %arg1: i32, %arg2: i32) -> (i32, i32) {
    %c0_i32 = arith.constant 0 : i32
    return %arg0, %arg1 : i32, i32
  }
  func.func @transform_3(%arg0: i32, %arg1: i32, %arg2: i32) -> (i32, i32, i32) {
    %c0_i32 = arith.constant 0 : i32
    %c0_i32_0 = arith.constant 0 : i32
    return %arg0, %c0_i32, %arg1 : i32, i32, i32
  }
}

</mosaic_0001>

<llo_original>
// kernel: tpu_custom_call.1
$region0: #{tpu_custom_call.1}
  #allocation0 [shape = 'u32[]', space=smem, size = 0x4, offset = 0x4, fixed_abs, tag = 'smem constant byte address 0x4 - core index']
  #allocation1 [shape = 'u32[144,128]{1,0:T(1,128)}', space=vmem, size = 0x12000, scoped, tag = 'internal scratch']
  #allocation2 [shape = 'f32[128,128]{1,0:T(8,128)}', space=vmem, size = 0x10000, scoped, tag = 'scratch operand']
  %s0 = inlined_call_operand.hbm [shape: bf16[512,128], index: 0, kind: input, shape index: {}]
  %s1 = inlined_call_operand.hbm [shape: bf16[128,128], index: 1, kind: input, shape index: {}]
  %s2 = inlined_call_operand.hbm [shape: bf16[512,128], index: 2, kind: output, shape index: {0}]
  %s3 = inlined_call_operand.hbm [shape: f32[4,8,128], index: 3, kind: output, shape index: {1}]
  %4 = xla_tuple %s2, %s3
  %s5 = sld [smem:[#allocation0]]
  $region65: #{tpu_custom_call.1} parent=0
    _
  %s7 = ssub.s32 1, %s5
  %s8 = scalar_select 0, %s7, %s5
  $region1: #{tpu_custom_call.1} parent=0
    #allocation3 [shape = 'u8[65536]{0}', space=vmem, size = 0x10000, scoped, tag = 'input window, operand 0']
    #allocation4 [shape = 's32[2]{0}', space=sflag, size = 0x8, scoped, tag = 'scoped memory for tpu_custom_call.1']
    #allocation5 [shape = 's32[2]{0}', space=sflag, size = 0x8, scoped, tag = 'scoped memory for tpu_custom_call.1']
    #allocation6 [shape = 'u8[32768]{0}', space=vmem, size = 0x8000, scoped, tag = 'input window, operand 1, single buffered']
    #allocation7 [shape = 's32[1]{0}', space=sflag, size = 0x4, scoped, tag = 'scoped memory for tpu_custom_call.1']
    #allocation8 [shape = 'u8[65536]{0}', space=vmem, size = 0x10000, scoped, tag = 'output window, operand 0']
    #allocation9 [shape = 'u8[8192]{0}', space=vmem, size = 0x2000, scoped, tag = 'output window, operand 1']
    #allocation10 [shape = 's32[2]{0}', space=sflag, size = 0x8, scoped, tag = 'scoped memory for tpu_custom_call.1']
    %9 = vsyncpa [#allocation4], 0
    %s10 = scalar_lea.sflag [#allocation4], 1
    %11 = vsyncpa %s10, 0
    %12 = vsyncpa [#allocation7], 0
    %13 = vsyncpa [#allocation5], 0
    %s14 = scalar_lea.sflag [#allocation5], 1
    %15 = vsyncpa %s14, 0
    %16 = vsyncpa [#allocation10], 0
    %s17 = scalar_lea.sflag [#allocation10], 1
    %18 = vsyncpa %s17, 0
    loop: start=0, step=1, limit=6
    $region2: #{tpu_custom_call.1} parent=1 // loop_pre_header
      _
    $region3: #{tpu_custom_call.1} parent=1 // loop_header
      %s20 = sphi 0, %s24
      %p21 = scmp.ge.s32.totalorder %s20, 6
      %s27 = sphi 0, %s46
      %s28 = sphi 0, %s42
      %s29 = sphi 0, %s38
      %s30 = sphi 0, %s27
      %s31 = sphi 0, %s28
      %s32 = sphi 0, %s29
      %s33 = sphi 0, %s30
      %s34 = sphi 0, %s31
      %s35 = sphi 0, %s32
      %s51 = sphi 0, %s53
      %s54 = sphi 0, %s51
      %s55 = sphi 0, %s54
      %s71 = sphi 0, %s55
      %s79 = sphi 0, %s81
      %s82 = sphi 0, %s79
      %s83 = sphi 0, %s82
      %s99 = sphi 0, %s83
      %s107 = sphi 0, %s109
      %s110 = sphi 0, %s107
      %s111 = sphi 0, %s110
      %s127 = sphi 0, %s111
      %s135 = sphi 0, %s137
      %s138 = sphi 0, %s135
      %s139 = sphi 0, %s138
      %s155 = sphi 0, %s139
    $region4: #{tpu_custom_call.1} parent=1 // loop_header_branch
      %23 = sbr.rel (%p21) target = $region8
    $region5: #{tpu_custom_call.1} parent=1 // loop_body
      %s25 = ssub.s32 %s20, 1
      %s26 = ssub.s32 %s20, 2
      %s36 = sadd.s32 1, %s29
      %p37 = scmp.ge.s32.totalorder %s36, 1
      %s38 = scalar_select %p37, 0, %s36
      %s39 = sadd.s32 1, %s28
      %s40 = scalar_select %p37, %s39, %s28
      %p41 = scmp.ge.s32.totalorder %s40, 1
      %s42 = scalar_select %p41, 0, %s40
      %s43 = sadd.s32 1, %s27
      %s44 = scalar_select %p41, %s43, %s27
      %p45 = scmp.ge.s32.totalorder %s44, 4
      %s46 = scalar_select %p45, 0, %s44
      %s47 = ssub.s32 %s27, %s46
      %s48 = ssub.s32 %s29, %s38
      %s49 = sor.u32 %s47, %s48
      %p50 = scmp.eq.s32.totalorder %s49, 0
      %s52 = sadd.s32 %s51, 1
      %s53 = scalar_select %p50, %s51, %s52
      %p56 = pneg %p50
      %p57 = scmp.eq.s32.totalorder %s20, 3
      %p58 = por %p56, %p57
      %p59 = scmp.ne.s32.totalorder %s51, %s54
      %p60 = scmp.eq.s32.totalorder %s20, 0
      %p61 = por %p59, %p60
      %p62 = scmp.ne.s32.totalorder %s51, %s54
      %p63 = scmp.eq.s32.totalorder %s25, 3
      %p64 = por %p62, %p63
      %p65 = scmp.ne.s32.totalorder %s54, %s55
      %p66 = scmp.eq.s32.totalorder %s25, 0
      %p67 = por %p65, %p66
      %p68 = scmp.ne.s32.totalorder %s54, %s55
      %p69 = scmp.eq.s32.totalorder %s26, 3
      %p70 = por %p68, %p69
      %p72 = scmp.ne.s32.totalorder %s55, %s71
      %p73 = scmp.eq.s32.totalorder %s26, 0
      %p74 = por %p72, %p73
      %s75 = ssub.s32 %s29, %s38
      %s76 = ssub.s32 %s28, %s42
      %s77 = sor.u32 %s75, %s76
      %p78 = scmp.eq.s32.totalorder %s77, 0
      %s80 = sadd.s32 %s79, 1
      %s81 = scalar_select %p78, %s79, %s80
      %p84 = pneg %p78
      %p85 = scmp.eq.s32.totalorder %s20, 3
      %p86 = por %p84, %p85
      %p87 = scmp.ne.s32.totalorder %s79, %s82
      %p88 = scmp.eq.s32.totalorder %s20, 0
      %p89 = por %p87, %p88
      %p90 = scmp.ne.s32.totalorder %s79, %s82
      %p91 = scmp.eq.s32.totalorder %s25, 3
      %p92 = por %p90, %p91
      %p93 = scmp.ne.s32.totalorder %s82, %s83
      %p94 = scmp.eq.s32.totalorder %s25, 0
      %p95 = por %p93, %p94
      %p96 = scmp.ne.s32.totalorder %s82, %s83
      %p97 = scmp.eq.s32.totalorder %s26, 3
      %p98 = por %p96, %p97
      %p100 = scmp.ne.s32.totalorder %s83, %s99
      %p101 = scmp.eq.s32.totalorder %s26, 0
      %p102 = por %p100, %p101
      %s103 = ssub.s32 %s27, %s46
      %s104 = ssub.s32 %s28, %s42
      %s105 = sor.u32 %s103, %s104
      %p106 = scmp.eq.s32.totalorder %s105, 0
      %s108 = sadd.s32 %s107, 1
      %s109 = scalar_select %p106, %s107, %s108
      %p112 = pneg %p106
      %p113 = scmp.eq.s32.totalorder %s20, 3
      %p114 = por %p112, %p113
      %p115 = scmp.ne.s32.totalorder %s107, %s110
      %p116 = scmp.eq.s32.totalorder %s20, 0
      %p117 = por %p115, %p116
      %p118 = scmp.ne.s32.totalorder %s107, %s110
      %p119 = scmp.eq.s32.totalorder %s25, 3
      %p120 = por %p118, %p119
      %p121 = scmp.ne.s32.totalorder %s110, %s111
      %p122 = scmp.eq.s32.totalorder %s25, 0
      %p123 = por %p121, %p122
      %p124 = scmp.ne.s32.totalorder %s110, %s111
      %p125 = scmp.eq.s32.totalorder %s26, 3
      %p126 = por %p124, %p125
      %p128 = scmp.ne.s32.totalorder %s111, %s127
      %p129 = scmp.eq.s32.totalorder %s26, 0
      %p130 = por %p128, %p129
      %s131 = ssub.s32 %s27, %s46
      %s132 = ssub.s32 %s28, %s42
      %s133 = sor.u32 %s131, %s132
      %p134 = scmp.eq.s32.totalorder %s133, 0
      %s136 = sadd.s32 %s135, 1
      %s137 = scalar_select %p134, %s135, %s136
      %p140 = pneg %p134
      %p141 = scmp.eq.s32.totalorder %s20, 3
      %p142 = por %p140, %p141
      %p143 = scmp.ne.s32.totalorder %s135, %s138
      %p144 = scmp.eq.s32.totalorder %s20, 0
      %p145 = por %p143, %p144
      %p146 = scmp.ne.s32.totalorder %s135, %s138
      %p147 = scmp.eq.s32.totalorder %s25, 3
      %p148 = por %p146, %p147
      %p149 = scmp.ne.s32.totalorder %s138, %s139
      %p150 = scmp.eq.s32.totalorder %s25, 0
      %p151 = por %p149, %p150
      %p152 = scmp.ne.s32.totalorder %s138, %s139
      %p153 = scmp.eq.s32.totalorder %s26, 3
      %p154 = por %p152, %p153
      %p156 = scmp.ne.s32.totalorder %s139, %s155
      %p157 = scmp.eq.s32.totalorder %s26, 0
      %p158 = por %p156, %p157
      %p159 = scmp.le.s32.totalorder 1, %s20
      %p160 = scmp.lt.s32.totalorder %s20, 5
      %p161 = pnand %p159, %p160
      %p162 = pneg %p161
      // Predicated region
      $region9: #{tpu_custom_call.1} parent=5 // pred_check
        _
      $region10: #{tpu_custom_call.1} parent=5 // pred_check_branch
        %164 = sbr.rel (%p161) target = $region12
      $region11: #{tpu_custom_call.1} parent=5 // pred_region
        %s165 = ssub.s32 %s20, 1
        // Predicated region
        $region13: #{tpu_custom_call.1} parent=11 // pred_check
          %p166 = pneg %p95
        $region14: #{tpu_custom_call.1} parent=11 // pred_check_branch
          %168 = sbr.rel (%p166) target = $region16
        $region15: #{tpu_custom_call.1} parent=11 // pred_region
          %s169 = smul.u32 16, %s32
          %s171 = ssub.s32 1024, 1024
          %172 = vsyncadd [#allocation7], %s171
          %s173 = sadd.s32 %s31, %s169
          %s174 = smul.addr %s173, 64
          %s175 = scalar_lea.hbm %s1, %s174
          %s176 = sshll.u32 [#allocation6], 4
          %s177 = int_to_ptr.vmem [resolvable:$true] %s176
          %182 = dma.hbm_to_vmem [thread:$0]  %s175, 1024, %s177, [#allocation7], 64, 64, 4
        $region16: #{tpu_custom_call.1} parent=11 // pred_fallthru
          _
      $region12: #{tpu_custom_call.1} parent=5 // pred_fallthru
        _
      %p183 = scmp.lt.s32.totalorder %s20, 4
      // Predicated region
      $region17: #{tpu_custom_call.1} parent=5 // pred_check
        %p184 = pneg %p183
      $region18: #{tpu_custom_call.1} parent=5 // pred_check_branch
        %186 = sbr.rel (%p184) target = $region20
      $region19: #{tpu_custom_call.1} parent=5 // pred_region
        // Predicated region
        $region21: #{tpu_custom_call.1} parent=19 // pred_check
          %p187 = pneg %p61
        $region22: #{tpu_custom_call.1} parent=19 // pred_check_branch
          %189 = sbr.rel (%p187) target = $region24
        $region23: #{tpu_custom_call.1} parent=19 // pred_region
          %s190 = sand.u32 %s51, 1
          %s191 = scalar_lea.sflag [#allocation4], %s190
          %s192 = sand.u32 %s51, 1
          %s193 = smul.addr %s192, 64
          %s194 = scalar_lea.vmem [#allocation3], %s193
          %s195 = smul.u32 16, %s27
          %s197 = ssub.s32 1024, 1024
          %198 = vsyncadd %s191, %s197
          %s199 = sadd.s32 %s29, %s195
          %s200 = smul.addr %s199, 64
          %s201 = scalar_lea.hbm %s0, %s200
          %s202 = sshll.u32 %s194, 4
          %s203 = int_to_ptr.vmem [resolvable:$true] %s202
          %208 = dma.hbm_to_vmem [thread:$0]  %s201, 1024, %s203, %s191, 64, 64, 4
        $region24: #{tpu_custom_call.1} parent=19 // pred_fallthru
          _
      $region20: #{tpu_custom_call.1} parent=5 // pred_fallthru
        _
      %p209 = scmp.le.s32.totalorder 1, %s20
      %p210 = scmp.lt.s32.totalorder %s20, 5
      %p211 = pnand %p209, %p210
      %p212 = pneg %p211
      // Predicated region
      $region25: #{tpu_custom_call.1} parent=5 // pred_check
        _
      $region26: #{tpu_custom_call.1} parent=5 // pred_check_branch
        %214 = sbr.rel (%p211) target = $region28
      $region27: #{tpu_custom_call.1} parent=5 // pred_region
        %s215 = ssub.s32 %s20, 1
        %s216 = sand.u32 %s54, 1
        %s217 = scalar_lea.sflag [#allocation4], %s216
        %s218 = sand.u32 %s54, 1
        %s219 = smul.addr %s218, 64
        %s220 = scalar_lea.vmem [#allocation3], %s219
        // Predicated region
        $region29: #{tpu_custom_call.1} parent=27 // pred_check
          %p221 = pneg %p67
        $region30: #{tpu_custom_call.1} parent=27 // pred_check_branch
          %223 = sbr.rel (%p221) target = $region32
        $region31: #{tpu_custom_call.1} parent=27 // pred_region
          %224 = dma.done %s217, 1024
        $region32: #{tpu_custom_call.1} parent=27 // pred_fallthru
          _
        // Predicated region
        $region33: #{tpu_custom_call.1} parent=27 // pred_check
          %p225 = pneg %p95
        $region34: #{tpu_custom_call.1} parent=27 // pred_check_branch
          %227 = sbr.rel (%p225) target = $region36
        $region35: #{tpu_custom_call.1} parent=27 // pred_region
          %228 = dma.done [#allocation7], 1024
        $region36: #{tpu_custom_call.1} parent=27 // pred_fallthru
          _
        %s229 = sand.u32 %s54, 1
        %s230 = scalar_lea.sflag [#allocation4], %s229
        %s231 = sand.u32 %s54, 1
        %s232 = smul.addr %s231, 64
        %s233 = scalar_lea.vmem [#allocation3], %s232
        %p234 = pneg %p67
        %p235 = pneg %p64
        %p236 = pneg %p95
        %p237 = pneg %p92
        %p238 = pneg %p123
        %p239 = pneg %p120
        %s240 = sand.u32 %s110, 1
        %s241 = scalar_lea.sflag [#allocation5], %s240
        %s242 = sand.u32 %s110, 1
        %s243 = smul.addr %s242, 64
        %s244 = scalar_lea.vmem [#allocation8], %s243
        %p245 = pneg %p151
        %p246 = pneg %p148
        %s247 = sand.u32 %s138, 1
        %s248 = scalar_lea.sflag [#allocation10], %s247
        %s249 = sand.u32 %s138, 1
        %s250 = smul.addr %s249, 8
        %s251 = scalar_lea.vmem [#allocation9], %s250
        %s252 = smul.u32 16, %s30
        %s253 = smul.u32 16, %s32
        %s254 = smul.u32 16, %s30
        %p256 = scmp.eq.s32.totalorder %s32, 0
        // Predicated region
        $region37: #{tpu_custom_call.1} parent=27 // pred_check
          %p257 = pneg %p256
        $region38: #{tpu_custom_call.1} parent=27 // pred_check_branch
          %259 = sbr.rel (%p257) target = $region40
        $region39: #{tpu_custom_call.1} parent=27 // pred_region
          %260 = vst [vmem:[#allocation2] sm:$0xff] 0.0
          %261 = vst [vmem:[#allocation2 + $0x8] sm:$0xff] 0.0
          %262 = vst [vmem:[#allocation2 + $0x10] sm:$0xff] 0.0
          %263 = vst [vmem:[#allocation2 + $0x18] sm:$0xff] 0.0
          %264 = vst [vmem:[#allocation2 + $0x20] sm:$0xff] 0.0
          %265 = vst [vmem:[#allocation2 + $0x28] sm:$0xff] 0.0
          %266 = vst [vmem:[#allocation2 + $0x30] sm:$0xff] 0.0
          %267 = vst [vmem:[#allocation2 + $0x38] sm:$0xff] 0.0
          %268 = vst [vmem:[#allocation2 + $0x40] sm:$0xff] 0.0
          %269 = vst [vmem:[#allocation2 + $0x48] sm:$0xff] 0.0
          %270 = vst [vmem:[#allocation2 + $0x50] sm:$0xff] 0.0
          %271 = vst [vmem:[#allocation2 + $0x58] sm:$0xff] 0.0
          %272 = vst [vmem:[#allocation2 + $0x60] sm:$0xff] 0.0
          %273 = vst [vmem:[#allocation2 + $0x68] sm:$0xff] 0.0
          %274 = vst [vmem:[#allocation2 + $0x70] sm:$0xff] 0.0
          %275 = vst [vmem:[#allocation2 + $0x78] sm:$0xff] 0.0
        $region40: #{tpu_custom_call.1} parent=27 // pred_fallthru
          _
        %v276 = vld [vmem:[#allocation2] sm:$0xff]
        %v277 = vld [vmem:[#allocation2 + $0x8] sm:$0xff]
        %v278 = vld [vmem:[#allocation2 + $0x10] sm:$0xff]
        %v279 = vld [vmem:[#allocation2 + $0x18] sm:$0xff]
        %v280 = vld [vmem:[#allocation2 + $0x20] sm:$0xff]
        %v281 = vld [vmem:[#allocation2 + $0x28] sm:$0xff]
        %v282 = vld [vmem:[#allocation2 + $0x30] sm:$0xff]
        %v283 = vld [vmem:[#allocation2 + $0x38] sm:$0xff]
        %v284 = vld [vmem:[#allocation2 + $0x40] sm:$0xff]
        %v285 = vld [vmem:[#allocation2 + $0x48] sm:$0xff]
        %v286 = vld [vmem:[#allocation2 + $0x50] sm:$0xff]
        %v287 = vld [vmem:[#allocation2 + $0x58] sm:$0xff]
        %v288 = vld [vmem:[#allocation2 + $0x60] sm:$0xff]
        %v289 = vld [vmem:[#allocation2 + $0x68] sm:$0xff]
        %v290 = vld [vmem:[#allocation2 + $0x70] sm:$0xff]
        %v291 = vld [vmem:[#allocation2 + $0x78] sm:$0xff]
        %v292 = vld [vmem:[%s220] sm:$0xf]
        %v293 = vld [vmem:[%s220 + $0x4] sm:$0xf]
        %v294 = vld [vmem:[%s220 + $0x8] sm:$0xf]
        %v295 = vld [vmem:[%s220 + $0xc] sm:$0xf]
        %v296 = vld [vmem:[%s220 + $0x10] sm:$0xf]
        %v297 = vld [vmem:[%s220 + $0x14] sm:$0xf]
        %v298 = vld [vmem:[%s220 + $0x18] sm:$0xf]
        %v299 = vld [vmem:[%s220 + $0x1c] sm:$0xf]
        %v300 = vld [vmem:[%s220 + $0x20] sm:$0xf]
        %v301 = vld [vmem:[%s220 + $0x24] sm:$0xf]
        %v302 = vld [vmem:[%s220 + $0x28] sm:$0xf]
        %v303 = vld [vmem:[%s220 + $0x2c] sm:$0xf]
        %v304 = vld [vmem:[%s220 + $0x30] sm:$0xf]
        %v305 = vld [vmem:[%s220 + $0x34] sm:$0xf]
        %v306 = vld [vmem:[%s220 + $0x38] sm:$0xf]
        %v307 = vld [vmem:[%s220 + $0x3c] sm:$0xf]
        %v308 = vld [vmem:[#allocation6] sm:$0xf]
        %v309 = vld [vmem:[#allocation6 + $0x4] sm:$0xf]
        %v310 = vld [vmem:[#allocation6 + $0x8] sm:$0xf]
        %v311 = vld [vmem:[#allocation6 + $0xc] sm:$0xf]
        %v312 = vld [vmem:[#allocation6 + $0x10] sm:$0xf]
        %v313 = vld [vmem:[#allocation6 + $0x14] sm:$0xf]
        %v314 = vld [vmem:[#allocation6 + $0x18] sm:$0xf]
        %v315 = vld [vmem:[#allocation6 + $0x1c] sm:$0xf]
        %v316 = vld [vmem:[#allocation6 + $0x20] sm:$0xf]
        %v317 = vld [vmem:[#allocation6 + $0x24] sm:$0xf]
        %v318 = vld [vmem:[#allocation6 + $0x28] sm:$0xf]
        %v319 = vld [vmem:[#allocation6 + $0x2c] sm:$0xf]
        %v320 = vld [vmem:[#allocation6 + $0x30] sm:$0xf]
        %v321 = vld [vmem:[#allocation6 + $0x34] sm:$0xf]
        %v322 = vld [vmem:[#allocation6 + $0x38] sm:$0xf]
        %v323 = vld [vmem:[#allocation6 + $0x3c] sm:$0xf]
        %v340 = vunpack.c.l.b16 %v292
        %v341 = vunpack.c.l.b16 %v293
        %v342 = vunpack.c.l.b16 %v294
        %v343 = vunpack.c.l.b16 %v295
        %v344 = vunpack.c.l.b16 %v296
        %v345 = vunpack.c.l.b16 %v297
        %v346 = vunpack.c.l.b16 %v298
        %v347 = vunpack.c.l.b16 %v299
        %v348 = vunpack.c.l.b16 %v300
        %v349 = vunpack.c.l.b16 %v301
        %v350 = vunpack.c.l.b16 %v302
        %v351 = vunpack.c.l.b16 %v303
        %v352 = vunpack.c.l.b16 %v304
        %v353 = vunpack.c.l.b16 %v305
        %v354 = vunpack.c.l.b16 %v306
        %v355 = vunpack.c.l.b16 %v307
        %v356 = vpack.c.b16 %v341, %v340
        %v357 = vpack.c.b16 %v343, %v342
        %v358 = vpack.c.b16 %v345, %v344
        %v359 = vpack.c.b16 %v347, %v346
        %v360 = vpack.c.b16 %v349, %v348
        %v361 = vpack.c.b16 %v351, %v350
        %v362 = vpack.c.b16 %v353, %v352
        %v363 = vpack.c.b16 %v355, %v354
        %v388 = vunpack.c.l.b16 %v308
        %v389 = vunpack.c.l.b16 %v309
        %v390 = vunpack.c.l.b16 %v310
        %v391 = vunpack.c.l.b16 %v311
        %v392 = vunpack.c.l.b16 %v312
        %v393 = vunpack.c.l.b16 %v313
        %v394 = vunpack.c.l.b16 %v314
        %v395 = vunpack.c.l.b16 %v315
        %v396 = vunpack.c.l.b16 %v316
        %v397 = vunpack.c.l.b16 %v317
        %v398 = vunpack.c.l.b16 %v318
        %v399 = vunpack.c.l.b16 %v319
        %v400 = vunpack.c.l.b16 %v320
        %v401 = vunpack.c.l.b16 %v321
        %v402 = vunpack.c.l.b16 %v322
        %v403 = vunpack.c.l.b16 %v323
        %v404 = vpack.c.b16 %v389, %v388
        %v405 = vpack.c.b16 %v391, %v390
        %v406 = vpack.c.b16 %v393, %v392
        %v407 = vpack.c.b16 %v395, %v394
        %v408 = vpack.c.b16 %v397, %v396
        %v409 = vpack.c.b16 %v399, %v398
        %v410 = vpack.c.b16 %v401, %v400
        %v411 = vpack.c.b16 %v403, %v402
        %420 = vmatprep.subr.bf16.mxu0 0
        %421 = vmatpush1.bf16.msra.mxu0 %v404
        %422 = vmatprep.subr.bf16.mxu0 0
        %423 = vmatpush1.bf16.msra.mxu0 %v405
        %424 = vmatprep.subr.bf16.mxu0 0
        %425 = vmatpush1.bf16.msra.mxu0 %v406
        %426 = vmatprep.subr.bf16.mxu0 0
        %427 = vmatpush1.bf16.msra.mxu0 %v407
        %428 = vmatprep.subr.bf16.mxu0 0
        %429 = vmatpush1.bf16.msra.mxu0 %v408
        %430 = vmatprep.subr.bf16.mxu0 0
        %431 = vmatpush1.bf16.msra.mxu0 %v409
        %432 = vmatprep.subr.bf16.mxu0 0
        %433 = vmatpush1.bf16.msra.mxu0 %v410
        %434 = vmatprep.subr.bf16.mxu0 0
        %435 = vmatpush1.bf16.msra.mxu0 %v411
        %436 = vmatprep.subr.bf16.mxu0 0
        %437 = vmatpush1.bf16.msra.mxu0 0
        %438 = vmatprep.subr.bf16.mxu0 0
        %439 = vmatpush1.bf16.msra.mxu0 0
        %440 = vmatprep.subr.bf16.mxu0 0
        %441 = vmatpush1.bf16.msra.mxu0 0
        %442 = vmatprep.subr.bf16.mxu0 0
        %443 = vmatpush1.bf16.msra.mxu0 0
        %444 = vmatprep.subr.bf16.mxu0 0
        %445 = vmatpush1.bf16.msra.mxu0 0
        %446 = vmatprep.subr.bf16.mxu0 0
        %447 = vmatpush1.bf16.msra.mxu0 0
        %448 = vmatprep.subr.bf16.mxu0 0
        %449 = vmatpush1.bf16.msra.mxu0 0
        %450 = vmatprep.subr.bf16.mxu0 0
        %451 = vmatpush1.bf16.msra.mxu0 0
        %452 = vmatprep.mubr.bf16.mxu0 0
        %453 = vmatmul.mubr.bf16.gmra.mrb[0].mxu0 %v356
        %v454 = vpop.f32.mrb[0].mxu0
        %v455 = vadd.f32 0.0, %v454
        %v456 = vpop.f32.mrb[0].mxu0
        %v457 = vpop.f32.mrb[0].mxu0
        %v458 = vadd.f32 0.0, %v457
        %v459 = vpop.f32.mrb[0].mxu0
        %460 = vmatprep.mubr.bf16.mxu0 0
        %461 = vmatmul.mubr.bf16.gmra.mrb[0].mxu0 %v357
        %v462 = vpop.f32.mrb[0].mxu0
        %v463 = vadd.f32 0.0, %v462
        %v464 = vpop.f32.mrb[0].mxu0
        %v465 = vpop.f32.mrb[0].mxu0
        %v466 = vadd.f32 0.0, %v465
        %v467 = vpop.f32.mrb[0].mxu0
        %468 = vmatprep.mubr.bf16.mxu0 0
        %469 = vmatmul.mubr.bf16.gmra.mrb[0].mxu0 %v358
        %v470 = vpop.f32.mrb[0].mxu0
        %v471 = vadd.f32 0.0, %v470
        %v472 = vpop.f32.mrb[0].mxu0
        %v473 = vpop.f32.mrb[0].mxu0
        %v474 = vadd.f32 0.0, %v473
        %v475 = vpop.f32.mrb[0].mxu0
        %476 = vmatprep.mubr.bf16.mxu0 0
        %477 = vmatmul.mubr.bf16.gmra.mrb[0].mxu0 %v359
        %v478 = vpop.f32.mrb[0].mxu0
        %v479 = vadd.f32 0.0, %v478
        %v480 = vpop.f32.mrb[0].mxu0
        %v481 = vpop.f32.mrb[0].mxu0
        %v482 = vadd.f32 0.0, %v481
        %v483 = vpop.f32.mrb[0].mxu0
        %484 = vmatprep.mubr.bf16.mxu0 0
        %485 = vmatmul.mubr.bf16.gmra.mrb[0].mxu0 %v360
        %v486 = vpop.f32.mrb[0].mxu0
        %v487 = vadd.f32 0.0, %v486
        %v488 = vpop.f32.mrb[0].mxu0
        %v489 = vpop.f32.mrb[0].mxu0
        %v490 = vadd.f32 0.0, %v489
        %v491 = vpop.f32.mrb[0].mxu0
        %492 = vmatprep.mubr.bf16.mxu0 0
        %493 = vmatmul.mubr.bf16.gmra.mrb[0].mxu0 %v361
        %v494 = vpop.f32.mrb[0].mxu0
        %v495 = vadd.f32 0.0, %v494
        %v496 = vpop.f32.mrb[0].mxu0
        %v497 = vpop.f32.mrb[0].mxu0
        %v498 = vadd.f32 0.0, %v497
        %v499 = vpop.f32.mrb[0].mxu0
        %500 = vmatprep.mubr.bf16.mxu0 0
        %501 = vmatmul.mubr.bf16.gmra.mrb[0].mxu0 %v362
        %v502 = vpop.f32.mrb[0].mxu0
        %v503 = vadd.f32 0.0, %v502
        %v504 = vpop.f32.mrb[0].mxu0
        %v505 = vpop.f32.mrb[0].mxu0
        %v506 = vadd.f32 0.0, %v505
        %v507 = vpop.f32.mrb[0].mxu0
        %508 = vmatprep.mubr.bf16.mxu0 0
        %509 = vmatmul.mubr.bf16.gmra.mrb[0].mxu0 %v363
        %v510 = vpop.f32.mrb[0].mxu0
        %v511 = vadd.f32 0.0, %v510
        %v512 = vpop.f32.mrb[0].mxu0
        %v513 = vpop.f32.mrb[0].mxu0
        %v514 = vadd.f32 0.0, %v513
        %v515 = vpop.f32.mrb[0].mxu0
        %516 = vdwg.mxu0
        %v517 = vadd.f32 %v276, %v455
        %v518 = vadd.f32 %v277, %v458
        %v519 = vadd.f32 %v278, %v463
        %v520 = vadd.f32 %v279, %v466
        %v521 = vadd.f32 %v280, %v471
        %v522 = vadd.f32 %v281, %v474
        %v523 = vadd.f32 %v282, %v479
        %v524 = vadd.f32 %v283, %v482
        %v525 = vadd.f32 %v284, %v487
        %v526 = vadd.f32 %v285, %v490
        %v527 = vadd.f32 %v286, %v495
        %v528 = vadd.f32 %v287, %v498
        %v529 = vadd.f32 %v288, %v503
        %v530 = vadd.f32 %v289, %v506
        %v531 = vadd.f32 %v290, %v511
        %v532 = vadd.f32 %v291, %v514
        %533 = vst [vmem:[#allocation2] sm:$0xff] %v517
        %534 = vst [vmem:[#allocation2 + $0x8] sm:$0xff] %v518
        %535 = vst [vmem:[#allocation2 + $0x10] sm:$0xff] %v519
        %536 = vst [vmem:[#allocation2 + $0x18] sm:$0xff] %v520
        %537 = vst [vmem:[#allocation2 + $0x20] sm:$0xff] %v521
        %538 = vst [vmem:[#allocation2 + $0x28] sm:$0xff] %v522
        %539 = vst [vmem:[#allocation2 + $0x30] sm:$0xff] %v523
        %540 = vst [vmem:[#allocation2 + $0x38] sm:$0xff] %v524
        %541 = vst [vmem:[#allocation2 + $0x40] sm:$0xff] %v525
        %542 = vst [vmem:[#allocation2 + $0x48] sm:$0xff] %v526
        %543 = vst [vmem:[#allocation2 + $0x50] sm:$0xff] %v527
        %544 = vst [vmem:[#allocation2 + $0x58] sm:$0xff] %v528
        %545 = vst [vmem:[#allocation2 + $0x60] sm:$0xff] %v529
        %546 = vst [vmem:[#allocation2 + $0x68] sm:$0xff] %v530
        %547 = vst [vmem:[#allocation2 + $0x70] sm:$0xff] %v531
        %548 = vst [vmem:[#allocation2 + $0x78] sm:$0xff] %v532
        // Predicated region
        $region41: #{tpu_custom_call.1} parent=27 // pred_check
          %p549 = pneg %p256
        $region42: #{tpu_custom_call.1} parent=27 // pred_check_branch
          %551 = sbr.rel (%p549) target = $region44
        $region43: #{tpu_custom_call.1} parent=27 // pred_region
          %v552 = vld [vmem:[#allocation2] sm:$0xff]
          %v553 = vld [vmem:[#allocation2 + $0x8] sm:$0xff]
          %v554 = vld [vmem:[#allocation2 + $0x10] sm:$0xff]
          %v555 = vld [vmem:[#allocation2 + $0x18] sm:$0xff]
          %v556 = vld [vmem:[#allocation2 + $0x20] sm:$0xff]
          %v557 = vld [vmem:[#allocation2 + $0x28] sm:$0xff]
          %v558 = vld [vmem:[#allocation2 + $0x30] sm:$0xff]
          %v559 = vld [vmem:[#allocation2 + $0x38] sm:$0xff]
          %v560 = vld [vmem:[#allocation2 + $0x40] sm:$0xff]
          %v561 = vld [vmem:[#allocation2 + $0x48] sm:$0xff]
          %v562 = vld [vmem:[#allocation2 + $0x50] sm:$0xff]
          %v563 = vld [vmem:[#allocation2 + $0x58] sm:$0xff]
          %v564 = vld [vmem:[#allocation2 + $0x60] sm:$0xff]
          %v565 = vld [vmem:[#allocation2 + $0x68] sm:$0xff]
          %v566 = vld [vmem:[#allocation2 + $0x70] sm:$0xff]
          %v567 = vld [vmem:[#allocation2 + $0x78] sm:$0xff]
          %v568 = vpack.c.bf16 %v553, %v552
          %v569 = vpack.c.bf16 %v555, %v554
          %v570 = vpack.c.bf16 %v557, %v556
          %v571 = vpack.c.bf16 %v559, %v558
          %v572 = vpack.c.bf16 %v561, %v560
          %v573 = vpack.c.bf16 %v563, %v562
          %v574 = vpack.c.bf16 %v565, %v564
          %v575 = vpack.c.bf16 %v567, %v566
          %v584 = vunpack.c.l.b16 %v568
          %v585 = vunpack.c.h.b16 %v568
          %v586 = vunpack.c.l.b16 %v569
          %v587 = vunpack.c.h.b16 %v569
          %v588 = vunpack.c.l.b16 %v570
          %v589 = vunpack.c.h.b16 %v570
          %v590 = vunpack.c.l.b16 %v571
          %v591 = vunpack.c.h.b16 %v571
          %v592 = vunpack.c.l.b16 %v572
          %v593 = vunpack.c.h.b16 %v572
          %v594 = vunpack.c.l.b16 %v573
          %v595 = vunpack.c.h.b16 %v573
          %v596 = vunpack.c.l.b16 %v574
          %v597 = vunpack.c.h.b16 %v574
          %v598 = vunpack.c.l.b16 %v575
          %v599 = vunpack.c.h.b16 %v575
          %v600 = vpack.c.b16 %v584, %v584
          %v601 = vpack.c.b16 %v585, %v585
          %v602 = vpack.c.b16 %v586, %v586
          %v603 = vpack.c.b16 %v587, %v587
          %v604 = vpack.c.b16 %v588, %v588
          %v605 = vpack.c.b16 %v589, %v589
          %v606 = vpack.c.b16 %v590, %v590
          %v607 = vpack.c.b16 %v591, %v591
          %v608 = vpack.c.b16 %v592, %v592
          %v609 = vpack.c.b16 %v593, %v593
          %v610 = vpack.c.b16 %v594, %v594
          %v611 = vpack.c.b16 %v595, %v595
          %v612 = vpack.c.b16 %v596, %v596
          %v613 = vpack.c.b16 %v597, %v597
          %v614 = vpack.c.b16 %v598, %v598
          %v615 = vpack.c.b16 %v599, %v599
          %632 = vst [vmem:[%s244] sm:$0xf] %v600
          %633 = vst [vmem:[%s244 + $0x4] sm:$0xf] %v601
          %634 = vst [vmem:[%s244 + $0x8] sm:$0xf] %v602
          %635 = vst [vmem:[%s244 + $0xc] sm:$0xf] %v603
          %636 = vst [vmem:[%s244 + $0x10] sm:$0xf] %v604
          %637 = vst [vmem:[%s244 + $0x14] sm:$0xf] %v605
          %638 = vst [vmem:[%s244 + $0x18] sm:$0xf] %v606
          %639 = vst [vmem:[%s244 + $0x1c] sm:$0xf] %v607
          %640 = vst [vmem:[%s244 + $0x20] sm:$0xf] %v608
          %641 = vst [vmem:[%s244 + $0x24] sm:$0xf] %v609
          %642 = vst [vmem:[%s244 + $0x28] sm:$0xf] %v610
          %643 = vst [vmem:[%s244 + $0x2c] sm:$0xf] %v611
          %644 = vst [vmem:[%s244 + $0x30] sm:$0xf] %v612
          %645 = vst [vmem:[%s244 + $0x34] sm:$0xf] %v613
          %646 = vst [vmem:[%s244 + $0x38] sm:$0xf] %v614
          %647 = vst [vmem:[%s244 + $0x3c] sm:$0xf] %v615
          %v648 = vadd.f32 %v552, %v553
          %v649 = vadd.f32 %v648, %v554
          %v650 = vadd.f32 %v649, %v555
          %v651 = vadd.f32 %v650, %v556
          %v652 = vadd.f32 %v651, %v557
          %v653 = vadd.f32 %v652, %v558
          %v654 = vadd.f32 %v653, %v559
          %v655 = vadd.f32 %v654, %v560
          %v656 = vadd.f32 %v655, %v561
          %v657 = vadd.f32 %v656, %v562
          %v658 = vadd.f32 %v657, %v563
          %v659 = vadd.f32 %v658, %v564
          %v660 = vadd.f32 %v659, %v565
          %v661 = vadd.f32 %v660, %v566
          %v662 = vadd.f32 %v661, %v567
          %v663 = vrot.slane %v662, 4
          %v664 = vadd.f32 %v662, %v663
          %v665 = vrot.slane %v664, 2
          %v666 = vadd.f32 %v664, %v665
          %v667 = vrot.slane %v666, 1
          %v668 = vadd.f32 %v666, %v667
          %v669 = vmul.f32 %v552, %v552
          %v670 = vmul.f32 %v553, %v553
          %v671 = vmul.f32 %v554, %v554
          %v672 = vmul.f32 %v555, %v555
          %v673 = vmul.f32 %v556, %v556
          %v674 = vmul.f32 %v557, %v557
          %v675 = vmul.f32 %v558, %v558
          %v676 = vmul.f32 %v559, %v559
          %v677 = vmul.f32 %v560, %v560
          %v678 = vmul.f32 %v561, %v561
          %v679 = vmul.f32 %v562, %v562
          %v680 = vmul.f32 %v563, %v563
          %v681 = vmul.f32 %v564, %v564
          %v682 = vmul.f32 %v565, %v565
          %v683 = vmul.f32 %v566, %v566
          %v684 = vmul.f32 %v567, %v567
          %v685 = vadd.f32 %v669, %v670
          %v686 = vadd.f32 %v685, %v671
          %v687 = vadd.f32 %v686, %v672
          %v688 = vadd.f32 %v687, %v673
          %v689 = vadd.f32 %v688, %v674
          %v690 = vadd.f32 %v689, %v675
          %v691 = vadd.f32 %v690, %v676
          %v692 = vadd.f32 %v691, %v677
          %v693 = vadd.f32 %v692, %v678
          %v694 = vadd.f32 %v693, %v679
          %v695 = vadd.f32 %v694, %v680
          %v696 = vadd.f32 %v695, %v681
          %v697 = vadd.f32 %v696, %v682
          %v698 = vadd.f32 %v697, %v683
          %v699 = vadd.f32 %v698, %v684
          %v700 = vrot.slane %v699, 4
          %v701 = vadd.f32 %v699, %v700
          %v702 = vrot.slane %v701, 2
          %v703 = vadd.f32 %v701, %v702
          %v704 = vrot.slane %v703, 1
          %v705 = vadd.f32 %v703, %v704
          %vm706 = vcmask 1040384
          %v707 = vsel %vm706, %v668, %v705
          %vm708 = vcmask 1041408
          %v709 = vsel %vm708, %v707, 0.0
          %710 = vst [vmem:[%s251] sm:$0xff] %v709
        $region44: #{tpu_custom_call.1} parent=27 // pred_fallthru
          _
        %s711 = sand.u32 %s110, 1
        %s712 = scalar_lea.sflag [#allocation5], %s711
        %s713 = sand.u32 %s110, 1
        %s714 = smul.addr %s713, 64
        %s715 = scalar_lea.vmem [#allocation8], %s714
        %s716 = sand.u32 %s138, 1
        %s717 = scalar_lea.sflag [#allocation10], %s716
        %s718 = sand.u32 %s138, 1
        %s719 = smul.addr %s718, 8
        %s720 = scalar_lea.vmem [#allocation9], %s719
        // Predicated region
        $region45: #{tpu_custom_call.1} parent=27 // pred_check
          %p721 = pneg %p120
        $region46: #{tpu_custom_call.1} parent=27 // pred_check_branch
          %723 = sbr.rel (%p721) target = $region48
        $region47: #{tpu_custom_call.1} parent=27 // pred_region
          %s724 = smul.u32 16, %s30
          %s726 = ssub.s32 1024, 1024
          %727 = vsyncadd %s712, %s726
          %s728 = sadd.s32 %s31, %s724
          %s729 = smul.addr %s728, 64
          %s730 = scalar_lea.hbm %s2, %s729
          %s731 = sshll.u32 %s715, 4
          %s732 = int_to_ptr.vmem [resolvable:$true] %s731
          %737 = dma.vmem_to_hbm [thread:$0]  %s732, 1024, %s730, %s712, 64, 64, 4
        $region48: #{tpu_custom_call.1} parent=27 // pred_fallthru
          _
        // Predicated region
        $region49: #{tpu_custom_call.1} parent=27 // pred_check
          %p738 = pneg %p148
        $region50: #{tpu_custom_call.1} parent=27 // pred_check_branch
          %740 = sbr.rel (%p738) target = $region52
        $region51: #{tpu_custom_call.1} parent=27 // pred_region
          %s742 = ssub.s32 128, 128
          %743 = vsyncadd %s717, %s742
          %s744 = sadd.s32 %s31, %s30
          %s745 = smul.addr %s744, 128
          %s746 = scalar_lea.hbm %s3, %s745
          %s748 = sshll.u32 %s720, 4
          %s749 = int_to_ptr.vmem [resolvable:$true] %s748
          %751 = dma.vmem_to_hbm [thread:$0]  %s749, 128, %s746, %s717
        $region52: #{tpu_custom_call.1} parent=27 // pred_fallthru
          _
      $region28: #{tpu_custom_call.1} parent=5 // pred_fallthru
        _
      %p752 = scmp.le.s32.totalorder 2, %s20
      // Predicated region
      $region53: #{tpu_custom_call.1} parent=5 // pred_check
        %p753 = pneg %p752
      $region54: #{tpu_custom_call.1} parent=5 // pred_check_branch
        %755 = sbr.rel (%p753) target = $region56
      $region55: #{tpu_custom_call.1} parent=5 // pred_region
        %s756 = ssub.s32 %s20, 2
        // Predicated region
        $region57: #{tpu_custom_call.1} parent=55 // pred_check
          %p757 = pneg %p126
        $region58: #{tpu_custom_call.1} parent=55 // pred_check_branch
          %759 = sbr.rel (%p757) target = $region60
        $region59: #{tpu_custom_call.1} parent=55 // pred_region
          %s760 = sand.u32 %s111, 1
          %s761 = scalar_lea.sflag [#allocation5], %s760
          %s762 = sand.u32 %s111, 1
          %s763 = smul.addr %s762, 64
          %s764 = scalar_lea.vmem [#allocation8], %s763
          %765 = dma.done %s761, 1024
        $region60: #{tpu_custom_call.1} parent=55 // pred_fallthru
          _
        // Predicated region
        $region61: #{tpu_custom_call.1} parent=55 // pred_check
          %p766 = pneg %p154
        $region62: #{tpu_custom_call.1} parent=55 // pred_check_branch
          %768 = sbr.rel (%p766) target = $region64
        $region63: #{tpu_custom_call.1} parent=55 // pred_region
          %s769 = sand.u32 %s139, 1
          %s770 = scalar_lea.sflag [#allocation10], %s769
          %s771 = sand.u32 %s139, 1
          %s772 = smul.addr %s771, 8
          %s773 = scalar_lea.vmem [#allocation9], %s772
          %774 = dma.done %s770, 128
        $region64: #{tpu_custom_call.1} parent=55 // pred_fallthru
          _
      $region56: #{tpu_custom_call.1} parent=5 // pred_fallthru
        _
    $region6: #{tpu_custom_call.1} parent=1 // loop_footer
      %s24 = sadd.s32 1, %s20
    $region7: #{tpu_custom_call.1} parent=1 // loop_footer_branch
      %19 = sbr.rel target = $region3
    $region8: #{tpu_custom_call.1} parent=1 // loop_exit
      _
    %775 = vsyncpa [#allocation4], 1
    %s776 = scalar_lea.sflag [#allocation4], 1
    %777 = vsyncpa %s776, 1
    %778 = vsyncpa [#allocation7], 1
    %779 = vsyncpa [#allocation5], 1
    %s780 = scalar_lea.sflag [#allocation5], 1
    %781 = vsyncpa %s780, 1
    %782 = vsyncpa [#allocation10], 1
    %s783 = scalar_lea.sflag [#allocation10], 1
    %784 = vsyncpa %s783, 1

</llo_original>
